<compile_context>
chip_gen: v5e
topology: v5e:2x2
jax: 0.10.0
libtpu: 0.0.40
codegen_flags: <defaults>
</compile_context>

<pallas_src>
import functools
from math import sqrt

import jax
import jax.numpy as jnp
from jax.experimental import pallas as pl
from jax.experimental.pallas import tpu as pltpu

EMBEDDING_SIZE = 64
NUM_HEADS = 4
HEAD_SIZE = EMBEDDING_SIZE // NUM_HEADS
DROPOUT_RATE = 0.1          # identity in eval mode
_SCALE = 1.0 / sqrt(HEAD_SIZE)   # 0.25 (exact power of two)


def _mha_kernel(x_ref, wqkv_ref, wo_ref, bo_ref, o_ref):
    """x_ref: (block_b, S, E); wqkv_ref: (E, 3*E) packed [Q|K|V] per-head cols;
    wo_ref: (E, E) = W_out^T; bo_ref: (1, E); o_ref: (block_b, S, E)."""
    block_b, S, E = x_ref.shape
    rows = block_b * S

    # Flatten batch*seq to rows (sublanes); E maps to lanes.
    x2 = x_ref[...].reshape(rows, E)

    # Fused Q/K/V projection for all heads: one wide MXU matmul.
    # Column layout: [q_h0..q_h3 | k_h0..k_h3 | v_h0..v_h3], D=16 lanes per head.
    # (1/sqrt(D) already folded into the Q columns in the wrapper.)
    qkv = jnp.dot(x2, wqkv_ref[...], preferred_element_type=jnp.float32)

    head_outs = []
    for h in range(NUM_HEADS):                       # static unroll, H = 4
        q = qkv[:, h * HEAD_SIZE:(h + 1) * HEAD_SIZE]
        k = qkv[:, E + h * HEAD_SIZE:E + (h + 1) * HEAD_SIZE]
        v = qkv[:, 2 * E + h * HEAD_SIZE:2 * E + (h + 1) * HEAD_SIZE]

        qb = q.reshape(block_b, S, HEAD_SIZE)
        kb = k.reshape(block_b, S, HEAD_SIZE)
        vb = v.reshape(block_b, S, HEAD_SIZE)

        # Scaled dot-product attention (scale pre-folded into q).
        s = jnp.einsum('bqd,bkd->bqk', qb, kb,
                       preferred_element_type=jnp.float32)
        s = s - jnp.max(s, axis=-1, keepdims=True)   # stable softmax
        p = jnp.exp(s)
        l = jnp.sum(p, axis=-1, keepdims=True)
        # Deferred normalization: weight V with un-normalized probs, then scale
        # the (rows, D) result by the reciprocal row sum (O(S*D) vs O(S^2)).
        ho = jnp.einsum('bqk,bkd->bqd', p, vb,
                        preferred_element_type=jnp.float32)
        ho = ho * (1.0 / l)
        head_outs.append(ho.reshape(rows, HEAD_SIZE))

    # concat(heads) -> single wide output projection + bias.
    cat = jnp.concatenate(head_outs, axis=-1)        # (rows, E)
    out = jnp.dot(cat, wo_ref[...], preferred_element_type=jnp.float32)
    out = out + jnp.broadcast_to(bo_ref[...], (rows, E))

    # TODO(synk): nn.Dropout(0.1) in training mode would need pltpu.prng_seed /
    # prng_random_bits (and can't bit-match torch RNG anyway); eval mode is identity.
    o_ref[...] = out.reshape(block_b, S, E).astype(o_ref.dtype)


def _choose_block_b(B, S, target_rows=2048, vmem_budget=20 * (1 << 20)):
    """Pick a batch tile: big enough to amortize per-step overhead (~0.35 us),
    a divisor of B (no padded tail), and within a conservative VMEM working-set
    budget that is safe on v5e/v6e/v7x."""
    def est_bytes(bb):
        rows = bb * S
        io = 2 * 2 * rows * EMBEDDING_SIZE * 4        # x + out, double-buffered
        qkv = rows * 3 * EMBEDDING_SIZE * 4           # fused projection result
        scores = 2 * bb * S * S * 4                   # s / p temporaries (reused per head)
        acc = 2 * rows * EMBEDDING_SIZE * 4           # concat + projected output
        return io + qkv + scores + acc

    bb = max(1, min(B, max(1, target_rows // max(S, 1))))
    while bb > 1 and (B % bb != 0 or est_bytes(bb) > vmem_budget):
        bb -= 1
    return bb


@functools.partial(jax.jit, static_argnames=("block_b",))
def multi_head_attention(x, wq, wk, wv, w_out, b_out, *, block_b=None):
    """x: (B, S, E) f32.  wq/wk/wv: (H, E, D) (per-head W^T).
    w_out: (E, E) PyTorch layout (out_features, in_features).  b_out: (E,)."""
    B, S, E = x.shape
    H, _, D = wq.shape
    assert E == EMBEDDING_SIZE and H == NUM_HEADS and D == HEAD_SIZE

    if block_b is None:
        block_b = _choose_block_b(B, S)
    assert B % block_b == 0

    # Pack per-head Q/K/V weights into one (E, 3*H*D) matrix; fold the
    # 1/sqrt(D) scale into the Q columns (exact: scale is a power of two).
    q_blk = jnp.transpose(wq, (1, 0, 2)).reshape(E, H * D) * _SCALE
    k_blk = jnp.transpose(wk, (1, 0, 2)).reshape(E, H * D)
    v_blk = jnp.transpose(wv, (1, 0, 2)).reshape(E, H * D)
    w_qkv = jnp.concatenate([q_blk, k_blk, v_blk], axis=-1)   # (E, 3E)

    w_o_t = w_out.T                                            # (E, E)
    bo2 = b_out.reshape(1, E)

    grid = (B // block_b,)
    return pl.pallas_call(
        _mha_kernel,
        out_shape=jax.ShapeDtypeStruct((B, S, E), x.dtype),
        grid_spec=pltpu.PrefetchScalarGridSpec(
            num_scalar_prefetch=0,
            grid=grid,
            in_specs=[
                pl.BlockSpec((block_b, S, E), lambda i: (i, 0, 0)),  # x tile
                pl.BlockSpec((E, 3 * E), lambda i: (0, 0)),          # packed Wqkv (resident)
                pl.BlockSpec((E, E), lambda i: (0, 0)),              # W_o^T (resident)
                pl.BlockSpec((1, E), lambda i: (0, 0)),              # b_o
            ],
            out_specs=pl.BlockSpec((block_b, S, E), lambda i: (i, 0, 0)),
        ),
        compiler_params=pltpu.CompilerParams(
            dimension_semantics=("parallel",),
            vmem_limit_bytes=48 * 1024 * 1024,
        ),
    )(x, w_qkv, w_o_t, bo2)


def _init_head_weights(key, n_heads, e, d):
    """nn.Linear(E, D, bias=False) default init U(-1/sqrt(E), 1/sqrt(E)),
    stored transposed as (H, E, D)."""
    bound = 1.0 / sqrt(e)
    w = jax.random.uniform(key, (n_heads, d, e), jnp.float32, -bound, bound)
    return jnp.swapaxes(w, -1, -2)


def _reference(x, wq, wk, wv, w_out, b_out):
    """Pure-JAX reference mirroring the PyTorch module (eval mode)."""
    heads = []
    for h in range(NUM_HEADS):
        q = x @ wq[h]
        k = x @ wk[h]
        v = x @ wv[h]
        s = jnp.einsum('bqd,bkd->bqk', q, k) * _SCALE
        p = jax.nn.softmax(s, axis=-1)
        heads.append(jnp.einsum('bqk,bkd->bqd', p, v))
    concat = jnp.concatenate(heads, axis=-1)
    return concat @ w_out.T + b_out


if __name__ == "__main__":
    key = jax.random.PRNGKey(0)
    kx, kq, kk, kv, ko, kb = jax.random.split(key, 6)

    B, S = 2, 8
    x = jax.random.normal(kx, (B, S, EMBEDDING_SIZE), jnp.float32)

    wq = _init_head_weights(kq, NUM_HEADS, EMBEDDING_SIZE, HEAD_SIZE)
    wk = _init_head_weights(kk, NUM_HEADS, EMBEDDING_SIZE, HEAD_SIZE)
    wv = _init_head_weights(kv, NUM_HEADS, EMBEDDING_SIZE, HEAD_SIZE)

    bound = 1.0 / sqrt(EMBEDDING_SIZE)
    w_out = jax.random.uniform(ko, (EMBEDDING_SIZE, EMBEDDING_SIZE),
                               jnp.float32, -bound, bound)
    b_out = jax.random.uniform(kb, (EMBEDDING_SIZE,), jnp.float32, -bound, bound)

    out = multi_head_attention(x, wq, wk, wv, w_out, b_out)
    out = jax.block_until_ready(out)

    ref = _reference(x, wq, wk, wv, w_out, b_out)
    assert out.shape == (B, S, EMBEDDING_SIZE)
    assert jnp.allclose(out, ref, atol=1e-5, rtol=1e-5), "mismatch vs reference"

    print("KERNEL_OK")
</pallas_src>

<mosaic_0001>
module attributes {stable_mosaic.version = 11 : i64} {
  func.func @_mha_kernel(%arg0: i32, %arg1: memref<2x8x64xf32, #tpu.memory_space<vmem>>, %arg2: memref<64x192xf32, #tpu.memory_space<vmem>>, %arg3: memref<64x64xf32, #tpu.memory_space<vmem>>, %arg4: memref<1x64xf32, #tpu.memory_space<vmem>>, %arg5: memref<2x8x64xf32, #tpu.memory_space<vmem>>) attributes {dimension_semantics = [#tpu.dimension_semantics<parallel>], iteration_bounds = array<i64: 1>, scalar_prefetch = 0 : i64, scratch_operands = 0 : i64, tpu.core_type = #tpu.core_type<tc>, window_params = [{transform_indices = @transform_0, window_bounds = array<i64: 2, 8, 64>}, {pipeline_mode = #tpu.pipeline_mode<synchronous>, transform_indices = @transform_1, window_bounds = array<i64: 64, 192>}, {pipeline_mode = #tpu.pipeline_mode<synchronous>, transform_indices = @transform_2, window_bounds = array<i64: 64, 64>}, {pipeline_mode = #tpu.pipeline_mode<synchronous>, transform_indices = @transform_3, window_bounds = array<i64: 1, 64>}, {transform_indices = @transform_4, window_bounds = array<i64: 2, 8, 64>}]} {
    %c0 = arith.constant 0 : index
    %c0_0 = arith.constant 0 : index
    %c0_1 = arith.constant 0 : index
    %0 = vector.load %arg1[%c0, %c0_0, %c0_1] : memref<2x8x64xf32, #tpu.memory_space<vmem>>, vector<2x8x64xf32>
    %1 = vector.shape_cast %0 : vector<2x8x64xf32> to vector<16x64xf32>
    %c0_2 = arith.constant 0 : index
    %c0_3 = arith.constant 0 : index
    %2 = vector.load %arg2[%c0_2, %c0_3] : memref<64x192xf32, #tpu.memory_space<vmem>>, vector<64x192xf32>
    %cst = arith.constant dense<0.000000e+00> : vector<16x192xf32>
    %3 = tpu.matmul %1, %2, %cst {dimension_numbers = #tpu.dot_dimension_numbers<[1], [0], [0], [1], [0, 0, 1, 1], [], []>} : vector<16x64xf32>, vector<64x192xf32>, vector<16x192xf32> -> vector<16x192xf32>
    %4 = vector.extract_strided_slice %3 {offsets = [0, 0], sizes = [16, 16], strides = [1, 1]} : vector<16x192xf32> to vector<16x16xf32>
    %5 = vector.extract_strided_slice %3 {offsets = [0, 64], sizes = [16, 16], strides = [1, 1]} : vector<16x192xf32> to vector<16x16xf32>
    %6 = vector.extract_strided_slice %3 {offsets = [0, 128], sizes = [16, 16], strides = [1, 1]} : vector<16x192xf32> to vector<16x16xf32>
    %7 = vector.shape_cast %4 : vector<16x16xf32> to vector<2x8x16xf32>
    %8 = vector.shape_cast %5 : vector<16x16xf32> to vector<2x8x16xf32>
    %9 = vector.shape_cast %6 : vector<16x16xf32> to vector<2x8x16xf32>
    "tpu.trace_start"() <{level = 10 : i32, message = "bqd,bkd->bqk"}> : () -> ()
    %cst_4 = arith.constant dense<0.000000e+00> : vector<2x8x8xf32>
    %10 = tpu.matmul %7, %8, %cst_4 {dimension_numbers = #tpu.dot_dimension_numbers<[2], [2], [1], [1], [0, 0, 0, 1, 1, 1], [0], [0]>} : vector<2x8x16xf32>, vector<2x8x16xf32>, vector<2x8x8xf32> -> vector<2x8x8xf32>
    "tpu.trace_stop"() : () -> ()
    %cst_5 = arith.constant dense<0xFF800000> : vector<2x8xf32>
    %11 = vector.multi_reduction <maximumf>, %10, %cst_5 [2] : vector<2x8x8xf32> to vector<2x8xf32>
    %12 = vector.shape_cast %11 : vector<2x8xf32> to vector<2x8x1xf32>
    %13 = vector.broadcast %12 : vector<2x8x1xf32> to vector<2x8x8xf32>
    %14 = arith.subf %10, %13 : vector<2x8x8xf32>
    %15 = math.exp %14 : vector<2x8x8xf32>
    %cst_6 = arith.constant dense<0.000000e+00> : vector<2x8xf32>
    %16 = vector.multi_reduction <add>, %15, %cst_6 [2] : vector<2x8x8xf32> to vector<2x8xf32>
    %17 = vector.shape_cast %16 : vector<2x8xf32> to vector<2x8x1xf32>
    "tpu.trace_start"() <{level = 10 : i32, message = "bqk,bkd->bqd"}> : () -> ()
    %cst_7 = arith.constant dense<0.000000e+00> : vector<2x8x16xf32>
    %18 = tpu.matmul %15, %9, %cst_7 {dimension_numbers = #tpu.dot_dimension_numbers<[2], [1], [1], [2], [0, 0, 0, 1, 1, 2], [0], [0]>} : vector<2x8x8xf32>, vector<2x8x16xf32>, vector<2x8x16xf32> -> vector<2x8x16xf32>
    "tpu.trace_stop"() : () -> ()
    %cst_8 = arith.constant 1.000000e+00 : f32
    %19 = vector.broadcast %cst_8 : f32 to vector<2x8x1xf32>
    %20 = arith.divf %19, %17 : vector<2x8x1xf32>
    %21 = vector.broadcast %20 : vector<2x8x1xf32> to vector<2x8x16xf32>
    %22 = arith.mulf %18, %21 : vector<2x8x16xf32>
    %23 = vector.shape_cast %22 : vector<2x8x16xf32> to vector<16x16xf32>
    %24 = vector.extract_strided_slice %3 {offsets = [0, 16], sizes = [16, 16], strides = [1, 1]} : vector<16x192xf32> to vector<16x16xf32>
    %25 = vector.extract_strided_slice %3 {offsets = [0, 80], sizes = [16, 16], strides = [1, 1]} : vector<16x192xf32> to vector<16x16xf32>
    %26 = vector.extract_strided_slice %3 {offsets = [0, 144], sizes = [16, 16], strides = [1, 1]} : vector<16x192xf32> to vector<16x16xf32>
    %27 = vector.shape_cast %24 : vector<16x16xf32> to vector<2x8x16xf32>
    %28 = vector.shape_cast %25 : vector<16x16xf32> to vector<2x8x16xf32>
    %29 = vector.shape_cast %26 : vector<16x16xf32> to vector<2x8x16xf32>
    "tpu.trace_start"() <{level = 10 : i32, message = "bqd,bkd->bqk"}> : () -> ()
    %cst_9 = arith.constant dense<0.000000e+00> : vector<2x8x8xf32>
    %30 = tpu.matmul %27, %28, %cst_9 {dimension_numbers = #tpu.dot_dimension_numbers<[2], [2], [1], [1], [0, 0, 0, 1, 1, 1], [0], [0]>} : vector<2x8x16xf32>, vector<2x8x16xf32>, vector<2x8x8xf32> -> vector<2x8x8xf32>
    "tpu.trace_stop"() : () -> ()
    %cst_10 = arith.constant dense<0xFF800000> : vector<2x8xf32>
    %31 = vector.multi_reduction <maximumf>, %30, %cst_10 [2] : vector<2x8x8xf32> to vector<2x8xf32>
    %32 = vector.shape_cast %31 : vector<2x8xf32> to vector<2x8x1xf32>
    %33 = vector.broadcast %32 : vector<2x8x1xf32> to vector<2x8x8xf32>
    %34 = arith.subf %30, %33 : vector<2x8x8xf32>
    %35 = math.exp %34 : vector<2x8x8xf32>
    %cst_11 = arith.constant dense<0.000000e+00> : vector<2x8xf32>
    %36 = vector.multi_reduction <add>, %35, %cst_11 [2] : vector<2x8x8xf32> to vector<2x8xf32>
    %37 = vector.shape_cast %36 : vector<2x8xf32> to vector<2x8x1xf32>
    "tpu.trace_start"() <{level = 10 : i32, message = "bqk,bkd->bqd"}> : () -> ()
    %cst_12 = arith.constant dense<0.000000e+00> : vector<2x8x16xf32>
    %38 = tpu.matmul %35, %29, %cst_12 {dimension_numbers = #tpu.dot_dimension_numbers<[2], [1], [1], [2], [0, 0, 0, 1, 1, 2], [0], [0]>} : vector<2x8x8xf32>, vector<2x8x16xf32>, vector<2x8x16xf32> -> vector<2x8x16xf32>
    "tpu.trace_stop"() : () -> ()
    %cst_13 = arith.constant 1.000000e+00 : f32
    %39 = vector.broadcast %cst_13 : f32 to vector<2x8x1xf32>
    %40 = arith.divf %39, %37 : vector<2x8x1xf32>
    %41 = vector.broadcast %40 : vector<2x8x1xf32> to vector<2x8x16xf32>
    %42 = arith.mulf %38, %41 : vector<2x8x16xf32>
    %43 = vector.shape_cast %42 : vector<2x8x16xf32> to vector<16x16xf32>
    %44 = vector.extract_strided_slice %3 {offsets = [0, 32], sizes = [16, 16], strides = [1, 1]} : vector<16x192xf32> to vector<16x16xf32>
    %45 = vector.extract_strided_slice %3 {offsets = [0, 96], sizes = [16, 16], strides = [1, 1]} : vector<16x192xf32> to vector<16x16xf32>
    %46 = vector.extract_strided_slice %3 {offsets = [0, 160], sizes = [16, 16], strides = [1, 1]} : vector<16x192xf32> to vector<16x16xf32>
    %47 = vector.shape_cast %44 : vector<16x16xf32> to vector<2x8x16xf32>
    %48 = vector.shape_cast %45 : vector<16x16xf32> to vector<2x8x16xf32>
    %49 = vector.shape_cast %46 : vector<16x16xf32> to vector<2x8x16xf32>
    "tpu.trace_start"() <{level = 10 : i32, message = "bqd,bkd->bqk"}> : () -> ()
    %cst_14 = arith.constant dense<0.000000e+00> : vector<2x8x8xf32>
    %50 = tpu.matmul %47, %48, %cst_14 {dimension_numbers = #tpu.dot_dimension_numbers<[2], [2], [1], [1], [0, 0, 0, 1, 1, 1], [0], [0]>} : vector<2x8x16xf32>, vector<2x8x16xf32>, vector<2x8x8xf32> -> vector<2x8x8xf32>
    "tpu.trace_stop"() : () -> ()
    %cst_15 = arith.constant dense<0xFF800000> : vector<2x8xf32>
    %51 = vector.multi_reduction <maximumf>, %50, %cst_15 [2] : vector<2x8x8xf32> to vector<2x8xf32>
    %52 = vector.shape_cast %51 : vector<2x8xf32> to vector<2x8x1xf32>
    %53 = vector.broadcast %52 : vector<2x8x1xf32> to vector<2x8x8xf32>
    %54 = arith.subf %50, %53 : vector<2x8x8xf32>
    %55 = math.exp %54 : vector<2x8x8xf32>
    %cst_16 = arith.constant dense<0.000000e+00> : vector<2x8xf32>
    %56 = vector.multi_reduction <add>, %55, %cst_16 [2] : vector<2x8x8xf32> to vector<2x8xf32>
    %57 = vector.shape_cast %56 : vector<2x8xf32> to vector<2x8x1xf32>
    "tpu.trace_start"() <{level = 10 : i32, message = "bqk,bkd->bqd"}> : () -> ()
    %cst_17 = arith.constant dense<0.000000e+00> : vector<2x8x16xf32>
    %58 = tpu.matmul %55, %49, %cst_17 {dimension_numbers = #tpu.dot_dimension_numbers<[2], [1], [1], [2], [0, 0, 0, 1, 1, 2], [0], [0]>} : vector<2x8x8xf32>, vector<2x8x16xf32>, vector<2x8x16xf32> -> vector<2x8x16xf32>
    "tpu.trace_stop"() : () -> ()
    %cst_18 = arith.constant 1.000000e+00 : f32
    %59 = vector.broadcast %cst_18 : f32 to vector<2x8x1xf32>
    %60 = arith.divf %59, %57 : vector<2x8x1xf32>
    %61 = vector.broadcast %60 : vector<2x8x1xf32> to vector<2x8x16xf32>
    %62 = arith.mulf %58, %61 : vector<2x8x16xf32>
    %63 = vector.shape_cast %62 : vector<2x8x16xf32> to vector<16x16xf32>
    %64 = vector.extract_strided_slice %3 {offsets = [0, 48], sizes = [16, 16], strides = [1, 1]} : vector<16x192xf32> to vector<16x16xf32>
    %65 = vector.extract_strided_slice %3 {offsets = [0, 112], sizes = [16, 16], strides = [1, 1]} : vector<16x192xf32> to vector<16x16xf32>
    %66 = vector.extract_strided_slice %3 {offsets = [0, 176], sizes = [16, 16], strides = [1, 1]} : vector<16x192xf32> to vector<16x16xf32>
    %67 = vector.shape_cast %64 : vector<16x16xf32> to vector<2x8x16xf32>
    %68 = vector.shape_cast %65 : vector<16x16xf32> to vector<2x8x16xf32>
    %69 = vector.shape_cast %66 : vector<16x16xf32> to vector<2x8x16xf32>
    "tpu.trace_start"() <{level = 10 : i32, message = "bqd,bkd->bqk"}> : () -> ()
    %cst_19 = arith.constant dense<0.000000e+00> : vector<2x8x8xf32>
    %70 = tpu.matmul %67, %68, %cst_19 {dimension_numbers = #tpu.dot_dimension_numbers<[2], [2], [1], [1], [0, 0, 0, 1, 1, 1], [0], [0]>} : vector<2x8x16xf32>, vector<2x8x16xf32>, vector<2x8x8xf32> -> vector<2x8x8xf32>
    "tpu.trace_stop"() : () -> ()
    %cst_20 = arith.constant dense<0xFF800000> : vector<2x8xf32>
    %71 = vector.multi_reduction <maximumf>, %70, %cst_20 [2] : vector<2x8x8xf32> to vector<2x8xf32>
    %72 = vector.shape_cast %71 : vector<2x8xf32> to vector<2x8x1xf32>
    %73 = vector.broadcast %72 : vector<2x8x1xf32> to vector<2x8x8xf32>
    %74 = arith.subf %70, %73 : vector<2x8x8xf32>
    %75 = math.exp %74 : vector<2x8x8xf32>
    %cst_21 = arith.constant dense<0.000000e+00> : vector<2x8xf32>
    %76 = vector.multi_reduction <add>, %75, %cst_21 [2] : vector<2x8x8xf32> to vector<2x8xf32>
    %77 = vector.shape_cast %76 : vector<2x8xf32> to vector<2x8x1xf32>
    "tpu.trace_start"() <{level = 10 : i32, message = "bqk,bkd->bqd"}> : () -> ()
    %cst_22 = arith.constant dense<0.000000e+00> : vector<2x8x16xf32>
    %78 = tpu.matmul %75, %69, %cst_22 {dimension_numbers = #tpu.dot_dimension_numbers<[2], [1], [1], [2], [0, 0, 0, 1, 1, 2], [0], [0]>} : vector<2x8x8xf32>, vector<2x8x16xf32>, vector<2x8x16xf32> -> vector<2x8x16xf32>
    "tpu.trace_stop"() : () -> ()
    %cst_23 = arith.constant 1.000000e+00 : f32
    %79 = vector.broadcast %cst_23 : f32 to vector<2x8x1xf32>
    %80 = arith.divf %79, %77 : vector<2x8x1xf32>
    %81 = vector.broadcast %80 : vector<2x8x1xf32> to vector<2x8x16xf32>
    %82 = arith.mulf %78, %81 : vector<2x8x16xf32>
    %83 = vector.shape_cast %82 : vector<2x8x16xf32> to vector<16x16xf32>
    %84 = tpu.concatenate %23, %43, %63, %83 in 1 : vector<16x16xf32>, vector<16x16xf32>, vector<16x16xf32>, vector<16x16xf32> -> vector<16x64xf32>
    %c0_24 = arith.constant 0 : index
    %c0_25 = arith.constant 0 : index
    %85 = vector.load %arg3[%c0_24, %c0_25] : memref<64x64xf32, #tpu.memory_space<vmem>>, vector<64x64xf32>
    %cst_26 = arith.constant dense<0.000000e+00> : vector<16x64xf32>
    %86 = tpu.matmul %84, %85, %cst_26 {dimension_numbers = #tpu.dot_dimension_numbers<[1], [0], [0], [1], [0, 0, 1, 1], [], []>} : vector<16x64xf32>, vector<64x64xf32>, vector<16x64xf32> -> vector<16x64xf32>
    %c0_27 = arith.constant 0 : index
    %c0_28 = arith.constant 0 : index
    %87 = vector.load %arg4[%c0_27, %c0_28] : memref<1x64xf32, #tpu.memory_space<vmem>>, vector<1x64xf32>
    %88 = vector.shape_cast %87 : vector<1x64xf32> to vector<1x64xf32>
    %89 = vector.broadcast %88 : vector<1x64xf32> to vector<16x64xf32>
    %90 = arith.addf %86, %89 : vector<16x64xf32>
    %91 = vector.shape_cast %90 : vector<16x64xf32> to vector<2x8x64xf32>
    %c0_29 = arith.constant 0 : index
    %c0_30 = arith.constant 0 : index
    %c0_31 = arith.constant 0 : index
    %92 = vector.load %arg5[%c0_29, %c0_30, %c0_31] : memref<2x8x64xf32, #tpu.memory_space<vmem>>, vector<2x8x64xf32>
    tpu.vector_store %arg5[%c0_29, %c0_30, %c0_31], %91 {strides = array<i32>} : memref<2x8x64xf32, #tpu.memory_space<vmem>>, vector<2x8x64xf32>,
    return
  }
  func.func @transform_0(%arg0: i32) -> (i32, i32, i32) {
    %c0_i32 = arith.constant 0 : i32
    %c0_i32_0 = arith.constant 0 : i32
    %c0_i32_1 = arith.constant 0 : i32
    return %arg0, %c0_i32, %c0_i32_0 : i32, i32, i32
  }
  func.func @transform_1(%arg0: i32) -> (i32, i32) {
    %c0_i32 = arith.constant 0 : i32
    %c0_i32_0 = arith.constant 0 : i32
    %c0_i32_1 = arith.constant 0 : i32
    return %c0_i32, %c0_i32_0 : i32, i32
  }
  func.func @transform_2(%arg0: i32) -> (i32, i32) {
    %c0_i32 = arith.constant 0 : i32
    %c0_i32_0 = arith.constant 0 : i32
    %c0_i32_1 = arith.constant 0 : i32
    return %c0_i32, %c0_i32_0 : i32, i32
  }
  func.func @transform_3(%arg0: i32) -> (i32, i32) {
    %c0_i32 = arith.constant 0 : i32
    %c0_i32_0 = arith.constant 0 : i32
    %c0_i32_1 = arith.constant 0 : i32
    return %c0_i32, %c0_i32_0 : i32, i32
  }
  func.func @transform_4(%arg0: i32) -> (i32, i32, i32) {
    %c0_i32 = arith.constant 0 : i32
    %c0_i32_0 = arith.constant 0 : i32
    %c0_i32_1 = arith.constant 0 : i32
    return %arg0, %c0_i32, %c0_i32_0 : i32, i32, i32
  }
}

</mosaic_0001>

<llo_original>
// kernel: multi_head_attention.1
$region0: #{multi_head_attention.1}
  #allocation0 [shape = 'u32[]', space=smem, size = 0x4, offset = 0x4, fixed_abs, tag = 'smem constant byte address 0x4 - core index']
  #allocation1 [shape = 'u32[72,128]{1,0:T(1,128)}', space=vmem, size = 0x9000, scoped, tag = 'internal scratch']
  %s0 = inlined_call_operand.vmem [shape: f32[2,8,64], index: 0, kind: input, shape index: {}]
  %s1 = inlined_call_operand.vmem [shape: f32[64,192], index: 1, kind: input, shape index: {}]
  %s2 = inlined_call_operand.vmem [shape: f32[64,64], index: 2, kind: input, shape index: {}]
  %s3 = inlined_call_operand.vmem [shape: f32[1,64], index: 3, kind: input, shape index: {}]
  %s4 = inlined_call_operand.hbm [shape: f32[2,8,64], index: 4, kind: output, shape index: {}]
  %s5 = sld [smem:[#allocation0]]
  $region26: #{multi_head_attention.1} parent=0
    _
  %s7 = ssub.s32 1, %s5
  %s8 = scalar_select 0, %s7, %s5
  $region1: #{multi_head_attention.1} parent=0
    #allocation2 [shape = 'u8[8192]{0}', space=vmem, size = 0x2000, scoped, tag = 'output window, operand 0, single buffered']
    #allocation3 [shape = 's32[1]{0}', space=sflag, size = 0x4, scoped, tag = 'scoped memory for multi_head_attention.1']
    %9 = vsyncpa [#allocation3], 0
    // Predicated region
    $region2: #{multi_head_attention.1} parent=1 // pred_check
      _
    $region3: #{multi_head_attention.1} parent=1 // pred_check_branch
      %11 = sbr.rel (0) target = $region5
    $region4: #{multi_head_attention.1} parent=1 // pred_region
      _
    $region5: #{multi_head_attention.1} parent=1 // pred_fallthru
      _
    // Predicated region
    $region6: #{multi_head_attention.1} parent=1 // pred_check
      _
    $region7: #{multi_head_attention.1} parent=1 // pred_check_branch
      %13 = sbr.rel (0) target = $region9
    $region8: #{multi_head_attention.1} parent=1 // pred_region
      _
    $region9: #{multi_head_attention.1} parent=1 // pred_fallthru
      _
    // Predicated region
    $region10: #{multi_head_attention.1} parent=1 // pred_check
      _
    $region11: #{multi_head_attention.1} parent=1 // pred_check_branch
      %15 = sbr.rel (0) target = $region13
    $region12: #{multi_head_attention.1} parent=1 // pred_region
      _
    $region13: #{multi_head_attention.1} parent=1 // pred_fallthru
      _
    // Predicated region
    $region14: #{multi_head_attention.1} parent=1 // pred_check
      _
    $region15: #{multi_head_attention.1} parent=1 // pred_check_branch
      %17 = sbr.rel (0) target = $region17
    $region16: #{multi_head_attention.1} parent=1 // pred_region
      _
    $region17: #{multi_head_attention.1} parent=1 // pred_fallthru
      _
    %v18 = vld [vmem:[%s0] sm:$0xff]
    %v19 = vld [vmem:[%s0 + $0x8] sm:$0xff]
    %v20 = vld [vmem:[%s1] sm:$0xff]
    %v21 = vld [vmem:[%s1 + $0x8] sm:$0xff]
    %v22 = vld [vmem:[%s1 + $0x10] sm:$0xff]
    %v23 = vld [vmem:[%s1 + $0x18] sm:$0xff]
    %v24 = vld [vmem:[%s1 + $0x20] sm:$0xff]
    %v25 = vld [vmem:[%s1 + $0x28] sm:$0xff]
    %v26 = vld [vmem:[%s1 + $0x30] sm:$0xff]
    %v27 = vld [vmem:[%s1 + $0x38] sm:$0xff]
    %v28 = vld [vmem:[%s1 + $0x40] sm:$0xff]
    %v29 = vld [vmem:[%s1 + $0x48] sm:$0xff]
    %v30 = vld [vmem:[%s1 + $0x50] sm:$0xff]
    %v31 = vld [vmem:[%s1 + $0x58] sm:$0xff]
    %v32 = vld [vmem:[%s1 + $0x60] sm:$0xff]
    %v33 = vld [vmem:[%s1 + $0x68] sm:$0xff]
    %v34 = vld [vmem:[%s1 + $0x70] sm:$0xff]
    %v35 = vld [vmem:[%s1 + $0x78] sm:$0xff]
    %vm36 = vcmask 523264
    %v38 = vsel %vm36, %v18, 0
    %v41 = vsel %vm36, %v19, 0
    %43 = vmatpush.msra.mxu0 0.0
    %44 = vmatpush.msra.mxu0 0.0
    %45 = vmatpush.msra.mxu0 0.0
    %46 = vmatpush.msra.mxu0 0.0
    %47 = vmatpush.msra.mxu0 0.0
    %48 = vmatpush.msra.mxu0 0.0
    %49 = vmatpush.msra.mxu0 0.0
    %50 = vmatpush.msra.mxu0 0.0
    %51 = vmatpush.msra.mxu0 %v34
    %52 = vmatpush.msra.mxu0 %v32
    %53 = vmatpush.msra.mxu0 %v30
    %54 = vmatpush.msra.mxu0 %v28
    %55 = vmatpush.msra.mxu0 %v26
    %56 = vmatpush.msra.mxu0 %v24
    %57 = vmatpush.msra.mxu0 %v22
    %58 = vmatpush.msra.mxu0 %v20
    %59 = vmatmul.f32.gmra.mxu0 %v38
    %v60 = vpop.f32.mrf.mxu0
    %v61 = vadd.f32 0.0, %v60
    %62 = vmatmul.f32.gmra.mxu0 %v41
    %v63 = vpop.f32.mrf.mxu0
    %v64 = vadd.f32 0.0, %v63
    %65 = vdwg.mxu0
    %66 = vmatpush.msra.mxu0 0.0
    %67 = vmatpush.msra.mxu0 0.0
    %68 = vmatpush.msra.mxu0 0.0
    %69 = vmatpush.msra.mxu0 0.0
    %70 = vmatpush.msra.mxu0 0.0
    %71 = vmatpush.msra.mxu0 0.0
    %72 = vmatpush.msra.mxu0 0.0
    %73 = vmatpush.msra.mxu0 0.0
    %74 = vmatpush.msra.mxu0 %v35
    %75 = vmatpush.msra.mxu0 %v33
    %76 = vmatpush.msra.mxu0 %v31
    %77 = vmatpush.msra.mxu0 %v29
    %78 = vmatpush.msra.mxu0 %v27
    %79 = vmatpush.msra.mxu0 %v25
    %80 = vmatpush.msra.mxu0 %v23
    %81 = vmatpush.msra.mxu0 %v21
    %82 = vmatmul.f32.gmra.mxu0 %v38
    %v83 = vpop.f32.mrf.mxu0
    %v84 = vadd.f32 0.0, %v83
    %85 = vmatmul.f32.gmra.mxu0 %v41
    %v86 = vpop.f32.mrf.mxu0
    %v87 = vadd.f32 0.0, %v86
    %88 = vdwg.mxu0
    %90 = vrot.lane.b32.xlu0 %v61, 64
    %v91 = vpop.permute.xlu0 %90
    %vm92 = vcmask 130048
    %v93 = vsel %vm92, %v61, 0
    %v95 = vsel %vm92, %v91, 0
    %97 = vmatpush.xpose.msra.mxu0 0.0
    %98 = vmatpush.xpose.msra.mxu0 0.0
    %99 = vmatpush.xpose.msra.mxu0 0.0
    %100 = vmatpush.xpose.msra.mxu0 0.0
    %101 = vmatpush.xpose.msra.mxu0 0.0
    %102 = vmatpush.xpose.msra.mxu0 0.0
    %103 = vmatpush.xpose.msra.mxu0 0.0
    %104 = vmatpush.xpose.msra.mxu0 0.0
    %105 = vmatpush.xpose.msra.mxu0 0.0
    %106 = vmatpush.xpose.msra.mxu0 0.0
    %107 = vmatpush.xpose.msra.mxu0 0.0
    %108 = vmatpush.xpose.msra.mxu0 0.0
    %109 = vmatpush.xpose.msra.mxu0 0.0
    %110 = vmatpush.xpose.msra.mxu0 0.0
    %111 = vmatpush.xpose.msra.mxu0 0.0
    %112 = vmatpush.xpose.msra.mxu0 %v95
    %113 = vmatmul.f32.gmra.mxu0 %v93
    %v114 = vpop.f32.mrf.mxu0
    %v115 = vadd.f32 0.0, %v114
    %116 = vdwg.mxu0
    %118 = vrot.lane.b32.xlu0 %v64, 64
    %v119 = vpop.permute.xlu0 %118
    %v120 = vsel %vm92, %v64, 0
    %v122 = vsel %vm92, %v119, 0
    %124 = vmatpush.xpose.msra.mxu0 0.0
    %125 = vmatpush.xpose.msra.mxu0 0.0
    %126 = vmatpush.xpose.msra.mxu0 0.0
    %127 = vmatpush.xpose.msra.mxu0 0.0
    %128 = vmatpush.xpose.msra.mxu0 0.0
    %129 = vmatpush.xpose.msra.mxu0 0.0
    %130 = vmatpush.xpose.msra.mxu0 0.0
    %131 = vmatpush.xpose.msra.mxu0 0.0
    %132 = vmatpush.xpose.msra.mxu0 0.0
    %133 = vmatpush.xpose.msra.mxu0 0.0
    %134 = vmatpush.xpose.msra.mxu0 0.0
    %135 = vmatpush.xpose.msra.mxu0 0.0
    %136 = vmatpush.xpose.msra.mxu0 0.0
    %137 = vmatpush.xpose.msra.mxu0 0.0
    %138 = vmatpush.xpose.msra.mxu0 0.0
    %139 = vmatpush.xpose.msra.mxu0 %v122
    %140 = vmatmul.f32.gmra.mxu0 %v120
    %v141 = vpop.f32.mrf.mxu0
    %v142 = vadd.f32 0.0, %v141
    %143 = vdwg.mxu0
    %vm144 = vcmask 64512
    %v145 = vsel %vm144, %v115, -inf
    %146 = vmax.xlane.f32.xlu0 %v145
    %v147 = vpop.xlane.xlu0 %146
    %v148 = vsel %vm144, %v142, -inf
    %149 = vmax.xlane.f32.xlu0 %v148
    %v150 = vpop.xlane.xlu0 %149
    %v151 = vsub.f32 %v115, %v147
    %v152 = vsub.f32 %v142, %v150
    %v153 = vmul.f32 %v151, 1.442695
    %v154 = vpow.pop %v153
    %v155 = vmul.f32 %v152, 1.442695
    %v156 = vpow.pop %v155
    %v157 = vsel %vm144, %v154, 0.0
    %158 = vadd.xlane.f32.xlu0 %v157
    %v159 = vpop.xlane.xlu0 %158
    %v160 = vsel %vm144, %v156, 0.0
    %161 = vadd.xlane.f32.xlu0 %v160
    %v162 = vpop.xlane.xlu0 %161
    %v164 = vsel %vm144, %v154, 0
    %166 = vmatpush.msra.mxu0 0.0
    %167 = vmatpush.msra.mxu0 0.0
    %168 = vmatpush.msra.mxu0 0.0
    %169 = vmatpush.msra.mxu0 0.0
    %170 = vmatpush.msra.mxu0 0.0
    %171 = vmatpush.msra.mxu0 0.0
    %172 = vmatpush.msra.mxu0 0.0
    %173 = vmatpush.msra.mxu0 0.0
    %174 = vmatpush.msra.mxu0 0.0
    %175 = vmatpush.msra.mxu0 0.0
    %176 = vmatpush.msra.mxu0 0.0
    %177 = vmatpush.msra.mxu0 0.0
    %178 = vmatpush.msra.mxu0 0.0
    %179 = vmatpush.msra.mxu0 0.0
    %180 = vmatpush.msra.mxu0 0.0
    %181 = vmatpush.msra.mxu0 %v84
    %182 = vmatmul.f32.gmra.mxu0 %v164
    %v183 = vpop.f32.mrf.mxu0
    %v184 = vadd.f32 0.0, %v183
    %185 = vdwg.mxu0
    %v187 = vsel %vm144, %v156, 0
    %189 = vmatpush.msra.mxu0 0.0
    %190 = vmatpush.msra.mxu0 0.0
    %191 = vmatpush.msra.mxu0 0.0
    %192 = vmatpush.msra.mxu0 0.0
    %193 = vmatpush.msra.mxu0 0.0
    %194 = vmatpush.msra.mxu0 0.0
    %195 = vmatpush.msra.mxu0 0.0
    %196 = vmatpush.msra.mxu0 0.0
    %197 = vmatpush.msra.mxu0 0.0
    %198 = vmatpush.msra.mxu0 0.0
    %199 = vmatpush.msra.mxu0 0.0
    %200 = vmatpush.msra.mxu0 0.0
    %201 = vmatpush.msra.mxu0 0.0
    %202 = vmatpush.msra.mxu0 0.0
    %203 = vmatpush.msra.mxu0 0.0
    %204 = vmatpush.msra.mxu0 %v87
    %205 = vmatmul.f32.gmra.mxu0 %v187
    %v206 = vpop.f32.mrf.mxu0
    %v207 = vadd.f32 0.0, %v206
    %208 = vdwg.mxu0
    %v209 = vrcp.pop %v159
    %v210 = vmul.f32 %v159, %v209
    %v211 = vsub.f32 1.0, %v210
    %v212 = vmul.f32 %v209, %v211
    %v213 = vadd.f32 %v209, %v212
    %vm214 = vweird.f32 %v159
    %vm215 = vweird.f32 %v209
    %vm216 = vmor %vm214, %vm215
    %v217 = vsel %vm216, %v209, %v213
    %v218 = vand.u32 2147483647, %v159
    %vm219 = vcmp.eq.f32.partialorder %v218, 8.507059e+37
    %v220 = vand.u32 %v159, 2147483648
    %v221 = vor.u32 1.1754944e-38, %v220
    %v222 = vsel %vm219, %v221, %v217
    %v223 = vmul.f32 1.0, %v222
    %v224 = vrcp.pop %v162
    %v225 = vmul.f32 %v162, %v224
    %v226 = vsub.f32 1.0, %v225
    %v227 = vmul.f32 %v224, %v226
    %v228 = vadd.f32 %v224, %v227
    %vm229 = vweird.f32 %v162
    %vm230 = vweird.f32 %v224
    %vm231 = vmor %vm229, %vm230
    %v232 = vsel %vm231, %v224, %v228
    %v233 = vand.u32 2147483647, %v162
    %vm234 = vcmp.eq.f32.partialorder %v233, 8.507059e+37
    %v235 = vand.u32 %v162, 2147483648
    %v236 = vor.u32 1.1754944e-38, %v235
    %v237 = vsel %vm234, %v236, %v232
    %v238 = vmul.f32 1.0, %v237
    %v239 = vmul.f32 %v184, %v223
    %v240 = vmul.f32 %v207, %v238
    %241 = vrot.lane.b32.xlu0 %v61, 112
    %v242 = vpop.permute.xlu0 %241
    %243 = vrot.lane.b32.xlu0 %v61, 48
    %v244 = vpop.permute.xlu0 %243
    %v245 = vsel %vm92, %v242, 0
    %v247 = vsel %vm92, %v244, 0
    %249 = vmatpush.xpose.msra.mxu0 0.0
    %250 = vmatpush.xpose.msra.mxu0 0.0
    %251 = vmatpush.xpose.msra.mxu0 0.0
    %252 = vmatpush.xpose.msra.mxu0 0.0
    %253 = vmatpush.xpose.msra.mxu0 0.0
    %254 = vmatpush.xpose.msra.mxu0 0.0
    %255 = vmatpush.xpose.msra.mxu0 0.0
    %256 = vmatpush.xpose.msra.mxu0 0.0
    %257 = vmatpush.xpose.msra.mxu0 0.0
    %258 = vmatpush.xpose.msra.mxu0 0.0
    %259 = vmatpush.xpose.msra.mxu0 0.0
    %260 = vmatpush.xpose.msra.mxu0 0.0
    %261 = vmatpush.xpose.msra.mxu0 0.0
    %262 = vmatpush.xpose.msra.mxu0 0.0
    %263 = vmatpush.xpose.msra.mxu0 0.0
    %264 = vmatpush.xpose.msra.mxu0 %v247
    %265 = vmatmul.f32.gmra.mxu0 %v245
    %v266 = vpop.f32.mrf.mxu0
    %v267 = vadd.f32 0.0, %v266
    %268 = vdwg.mxu0
    %269 = vrot.lane.b32.xlu0 %v64, 112
    %v270 = vpop.permute.xlu0 %269
    %271 = vrot.lane.b32.xlu0 %v64, 48
    %v272 = vpop.permute.xlu0 %271
    %v273 = vsel %vm92, %v270, 0
    %v275 = vsel %vm92, %v272, 0
    %277 = vmatpush.xpose.msra.mxu0 0.0
    %278 = vmatpush.xpose.msra.mxu0 0.0
    %279 = vmatpush.xpose.msra.mxu0 0.0
    %280 = vmatpush.xpose.msra.mxu0 0.0
    %281 = vmatpush.xpose.msra.mxu0 0.0
    %282 = vmatpush.xpose.msra.mxu0 0.0
    %283 = vmatpush.xpose.msra.mxu0 0.0
    %284 = vmatpush.xpose.msra.mxu0 0.0
    %285 = vmatpush.xpose.msra.mxu0 0.0
    %286 = vmatpush.xpose.msra.mxu0 0.0
    %287 = vmatpush.xpose.msra.mxu0 0.0
    %288 = vmatpush.xpose.msra.mxu0 0.0
    %289 = vmatpush.xpose.msra.mxu0 0.0
    %290 = vmatpush.xpose.msra.mxu0 0.0
    %291 = vmatpush.xpose.msra.mxu0 0.0
    %292 = vmatpush.xpose.msra.mxu0 %v275
    %293 = vmatmul.f32.gmra.mxu0 %v273
    %v294 = vpop.f32.mrf.mxu0
    %v295 = vadd.f32 0.0, %v294
    %296 = vdwg.mxu0
    %v297 = vsel %vm144, %v267, -inf
    %298 = vmax.xlane.f32.xlu0 %v297
    %v299 = vpop.xlane.xlu0 %298
    %v300 = vsel %vm144, %v295, -inf
    %301 = vmax.xlane.f32.xlu0 %v300
    %v302 = vpop.xlane.xlu0 %301
    %v303 = vsub.f32 %v267, %v299
    %v304 = vsub.f32 %v295, %v302
    %v305 = vmul.f32 %v303, 1.442695
    %v306 = vpow.pop %v305
    %v307 = vmul.f32 %v304, 1.442695
    %v308 = vpow.pop %v307
    %v309 = vsel %vm144, %v306, 0.0
    %310 = vadd.xlane.f32.xlu0 %v309
    %v311 = vpop.xlane.xlu0 %310
    %v312 = vsel %vm144, %v308, 0.0
    %313 = vadd.xlane.f32.xlu0 %v312
    %v314 = vpop.xlane.xlu0 %313
    %316 = vrot.lane.b32.xlu0 %v84, 112
    %v317 = vpop.permute.xlu0 %316
    %v320 = vsel %vm144, %v306, 0
    %322 = vmatpush.msra.mxu0 0.0
    %323 = vmatpush.msra.mxu0 0.0
    %324 = vmatpush.msra.mxu0 0.0
    %325 = vmatpush.msra.mxu0 0.0
    %326 = vmatpush.msra.mxu0 0.0
    %327 = vmatpush.msra.mxu0 0.0
    %328 = vmatpush.msra.mxu0 0.0
    %329 = vmatpush.msra.mxu0 0.0
    %330 = vmatpush.msra.mxu0 0.0
    %331 = vmatpush.msra.mxu0 0.0
    %332 = vmatpush.msra.mxu0 0.0
    %333 = vmatpush.msra.mxu0 0.0
    %334 = vmatpush.msra.mxu0 0.0
    %335 = vmatpush.msra.mxu0 0.0
    %336 = vmatpush.msra.mxu0 0.0
    %337 = vmatpush.msra.mxu0 %v317
    %338 = vmatmul.f32.gmra.mxu0 %v320
    %v339 = vpop.f32.mrf.mxu0
    %v340 = vadd.f32 0.0, %v339
    %341 = vdwg.mxu0
    %343 = vrot.lane.b32.xlu0 %v87, 112
    %v344 = vpop.permute.xlu0 %343
    %v347 = vsel %vm144, %v308, 0
    %349 = vmatpush.msra.mxu0 0.0
    %350 = vmatpush.msra.mxu0 0.0
    %351 = vmatpush.msra.mxu0 0.0
    %352 = vmatpush.msra.mxu0 0.0
    %353 = vmatpush.msra.mxu0 0.0
    %354 = vmatpush.msra.mxu0 0.0
    %355 = vmatpush.msra.mxu0 0.0
    %356 = vmatpush.msra.mxu0 0.0
    %357 = vmatpush.msra.mxu0 0.0
    %358 = vmatpush.msra.mxu0 0.0
    %359 = vmatpush.msra.mxu0 0.0
    %360 = vmatpush.msra.mxu0 0.0
    %361 = vmatpush.msra.mxu0 0.0
    %362 = vmatpush.msra.mxu0 0.0
    %363 = vmatpush.msra.mxu0 0.0
    %364 = vmatpush.msra.mxu0 %v344
    %365 = vmatmul.f32.gmra.mxu0 %v347
    %v366 = vpop.f32.mrf.mxu0
    %v367 = vadd.f32 0.0, %v366
    %368 = vdwg.mxu0
    %v369 = vrcp.pop %v311
    %v370 = vmul.f32 %v311, %v369
    %v371 = vsub.f32 1.0, %v370
    %v372 = vmul.f32 %v369, %v371
    %v373 = vadd.f32 %v369, %v372
    %vm374 = vweird.f32 %v311
    %vm375 = vweird.f32 %v369
    %vm376 = vmor %vm374, %vm375
    %v377 = vsel %vm376, %v369, %v373
    %v378 = vand.u32 2147483647, %v311
    %vm379 = vcmp.eq.f32.partialorder %v378, 8.507059e+37
    %v380 = vand.u32 %v311, 2147483648
    %v381 = vor.u32 1.1754944e-38, %v380
    %v382 = vsel %vm379, %v381, %v377
    %v383 = vmul.f32 1.0, %v382
    %v384 = vrcp.pop %v314
    %v385 = vmul.f32 %v314, %v384
    %v386 = vsub.f32 1.0, %v385
    %v387 = vmul.f32 %v384, %v386
    %v388 = vadd.f32 %v384, %v387
    %vm389 = vweird.f32 %v314
    %vm390 = vweird.f32 %v384
    %vm391 = vmor %vm389, %vm390
    %v392 = vsel %vm391, %v384, %v388
    %v393 = vand.u32 2147483647, %v314
    %vm394 = vcmp.eq.f32.partialorder %v393, 8.507059e+37
    %v395 = vand.u32 %v314, 2147483648
    %v396 = vor.u32 1.1754944e-38, %v395
    %v397 = vsel %vm394, %v396, %v392
    %v398 = vmul.f32 1.0, %v397
    %v399 = vmul.f32 %v340, %v383
    %v400 = vmul.f32 %v367, %v398
    %401 = vrot.lane.b32.xlu0 %v61, 96
    %v402 = vpop.permute.xlu0 %401
    %403 = vrot.lane.b32.xlu0 %v61, 32
    %v404 = vpop.permute.xlu0 %403
    %v405 = vsel %vm92, %v402, 0
    %v407 = vsel %vm92, %v404, 0
    %409 = vmatpush.xpose.msra.mxu0 0.0
    %410 = vmatpush.xpose.msra.mxu0 0.0
    %411 = vmatpush.xpose.msra.mxu0 0.0
    %412 = vmatpush.xpose.msra.mxu0 0.0
    %413 = vmatpush.xpose.msra.mxu0 0.0
    %414 = vmatpush.xpose.msra.mxu0 0.0
    %415 = vmatpush.xpose.msra.mxu0 0.0
    %416 = vmatpush.xpose.msra.mxu0 0.0
    %417 = vmatpush.xpose.msra.mxu0 0.0
    %418 = vmatpush.xpose.msra.mxu0 0.0
    %419 = vmatpush.xpose.msra.mxu0 0.0
    %420 = vmatpush.xpose.msra.mxu0 0.0
    %421 = vmatpush.xpose.msra.mxu0 0.0
    %422 = vmatpush.xpose.msra.mxu0 0.0
    %423 = vmatpush.xpose.msra.mxu0 0.0
    %424 = vmatpush.xpose.msra.mxu0 %v407
    %425 = vmatmul.f32.gmra.mxu0 %v405
    %v426 = vpop.f32.mrf.mxu0
    %v427 = vadd.f32 0.0, %v426
    %428 = vdwg.mxu0
    %429 = vrot.lane.b32.xlu0 %v64, 96
    %v430 = vpop.permute.xlu0 %429
    %431 = vrot.lane.b32.xlu0 %v64, 32
    %v432 = vpop.permute.xlu0 %431
    %v433 = vsel %vm92, %v430, 0
    %v435 = vsel %vm92, %v432, 0
    %437 = vmatpush.xpose.msra.mxu0 0.0
    %438 = vmatpush.xpose.msra.mxu0 0.0
    %439 = vmatpush.xpose.msra.mxu0 0.0
    %440 = vmatpush.xpose.msra.mxu0 0.0
    %441 = vmatpush.xpose.msra.mxu0 0.0
    %442 = vmatpush.xpose.msra.mxu0 0.0
    %443 = vmatpush.xpose.msra.mxu0 0.0
    %444 = vmatpush.xpose.msra.mxu0 0.0
    %445 = vmatpush.xpose.msra.mxu0 0.0
    %446 = vmatpush.xpose.msra.mxu0 0.0
    %447 = vmatpush.xpose.msra.mxu0 0.0
    %448 = vmatpush.xpose.msra.mxu0 0.0
    %449 = vmatpush.xpose.msra.mxu0 0.0
    %450 = vmatpush.xpose.msra.mxu0 0.0
    %451 = vmatpush.xpose.msra.mxu0 0.0
    %452 = vmatpush.xpose.msra.mxu0 %v435
    %453 = vmatmul.f32.gmra.mxu0 %v433
    %v454 = vpop.f32.mrf.mxu0
    %v455 = vadd.f32 0.0, %v454
    %456 = vdwg.mxu0
    %v457 = vsel %vm144, %v427, -inf
    %458 = vmax.xlane.f32.xlu0 %v457
    %v459 = vpop.xlane.xlu0 %458
    %v460 = vsel %vm144, %v455, -inf
    %461 = vmax.xlane.f32.xlu0 %v460
    %v462 = vpop.xlane.xlu0 %461
    %v463 = vsub.f32 %v427, %v459
    %v464 = vsub.f32 %v455, %v462
    %v465 = vmul.f32 %v463, 1.442695
    %v466 = vpow.pop %v465
    %v467 = vmul.f32 %v464, 1.442695
    %v468 = vpow.pop %v467
    %v469 = vsel %vm144, %v466, 0.0
    %470 = vadd.xlane.f32.xlu0 %v469
    %v471 = vpop.xlane.xlu0 %470
    %v472 = vsel %vm144, %v468, 0.0
    %473 = vadd.xlane.f32.xlu0 %v472
    %v474 = vpop.xlane.xlu0 %473
    %475 = vrot.lane.b32.xlu0 %v84, 96
    %v476 = vpop.permute.xlu0 %475
    %v479 = vsel %vm144, %v466, 0
    %481 = vmatpush.msra.mxu0 0.0
    %482 = vmatpush.msra.mxu0 0.0
    %483 = vmatpush.msra.mxu0 0.0
    %484 = vmatpush.msra.mxu0 0.0
    %485 = vmatpush.msra.mxu0 0.0
    %486 = vmatpush.msra.mxu0 0.0
    %487 = vmatpush.msra.mxu0 0.0
    %488 = vmatpush.msra.mxu0 0.0
    %489 = vmatpush.msra.mxu0 0.0
    %490 = vmatpush.msra.mxu0 0.0
    %491 = vmatpush.msra.mxu0 0.0
    %492 = vmatpush.msra.mxu0 0.0
    %493 = vmatpush.msra.mxu0 0.0
    %494 = vmatpush.msra.mxu0 0.0
    %495 = vmatpush.msra.mxu0 0.0
    %496 = vmatpush.msra.mxu0 %v476
    %497 = vmatmul.f32.gmra.mxu0 %v479
    %v498 = vpop.f32.mrf.mxu0
    %v499 = vadd.f32 0.0, %v498
    %500 = vdwg.mxu0
    %501 = vrot.lane.b32.xlu0 %v87, 96
    %v502 = vpop.permute.xlu0 %501
    %v505 = vsel %vm144, %v468, 0
    %507 = vmatpush.msra.mxu0 0.0
    %508 = vmatpush.msra.mxu0 0.0
    %509 = vmatpush.msra.mxu0 0.0
    %510 = vmatpush.msra.mxu0 0.0
    %511 = vmatpush.msra.mxu0 0.0
    %512 = vmatpush.msra.mxu0 0.0
    %513 = vmatpush.msra.mxu0 0.0
    %514 = vmatpush.msra.mxu0 0.0
    %515 = vmatpush.msra.mxu0 0.0
    %516 = vmatpush.msra.mxu0 0.0
    %517 = vmatpush.msra.mxu0 0.0
    %518 = vmatpush.msra.mxu0 0.0
    %519 = vmatpush.msra.mxu0 0.0
    %520 = vmatpush.msra.mxu0 0.0
    %521 = vmatpush.msra.mxu0 0.0
    %522 = vmatpush.msra.mxu0 %v502
    %523 = vmatmul.f32.gmra.mxu0 %v505
    %v524 = vpop.f32.mrf.mxu0
    %v525 = vadd.f32 0.0, %v524
    %526 = vdwg.mxu0
    %v527 = vrcp.pop %v471
    %v528 = vmul.f32 %v471, %v527
    %v529 = vsub.f32 1.0, %v528
    %v530 = vmul.f32 %v527, %v529
    %v531 = vadd.f32 %v527, %v530
    %vm532 = vweird.f32 %v471
    %vm533 = vweird.f32 %v527
    %vm534 = vmor %vm532, %vm533
    %v535 = vsel %vm534, %v527, %v531
    %v536 = vand.u32 2147483647, %v471
    %vm537 = vcmp.eq.f32.partialorder %v536, 8.507059e+37
    %v538 = vand.u32 %v471, 2147483648
    %v539 = vor.u32 1.1754944e-38, %v538
    %v540 = vsel %vm537, %v539, %v535
    %v541 = vmul.f32 1.0, %v540
    %v542 = vrcp.pop %v474
    %v543 = vmul.f32 %v474, %v542
    %v544 = vsub.f32 1.0, %v543
    %v545 = vmul.f32 %v542, %v544
    %v546 = vadd.f32 %v542, %v545
    %vm547 = vweird.f32 %v474
    %vm548 = vweird.f32 %v542
    %vm549 = vmor %vm547, %vm548
    %v550 = vsel %vm549, %v542, %v546
    %v551 = vand.u32 2147483647, %v474
    %vm552 = vcmp.eq.f32.partialorder %v551, 8.507059e+37
    %v553 = vand.u32 %v474, 2147483648
    %v554 = vor.u32 1.1754944e-38, %v553
    %v555 = vsel %vm552, %v554, %v550
    %v556 = vmul.f32 1.0, %v555
    %v557 = vmul.f32 %v499, %v541
    %v558 = vmul.f32 %v525, %v556
    %559 = vrot.lane.b32.xlu0 %v61, 80
    %v560 = vpop.permute.xlu0 %559
    %561 = vrot.lane.b32.xlu0 %v61, 16
    %v562 = vpop.permute.xlu0 %561
    %v563 = vsel %vm92, %v560, 0
    %v565 = vsel %vm92, %v562, 0
    %567 = vmatpush.xpose.msra.mxu0 0.0
    %568 = vmatpush.xpose.msra.mxu0 0.0
    %569 = vmatpush.xpose.msra.mxu0 0.0
    %570 = vmatpush.xpose.msra.mxu0 0.0
    %571 = vmatpush.xpose.msra.mxu0 0.0
    %572 = vmatpush.xpose.msra.mxu0 0.0
    %573 = vmatpush.xpose.msra.mxu0 0.0
    %574 = vmatpush.xpose.msra.mxu0 0.0
    %575 = vmatpush.xpose.msra.mxu0 0.0
    %576 = vmatpush.xpose.msra.mxu0 0.0
    %577 = vmatpush.xpose.msra.mxu0 0.0
    %578 = vmatpush.xpose.msra.mxu0 0.0
    %579 = vmatpush.xpose.msra.mxu0 0.0
    %580 = vmatpush.xpose.msra.mxu0 0.0
    %581 = vmatpush.xpose.msra.mxu0 0.0
    %582 = vmatpush.xpose.msra.mxu0 %v565
    %583 = vmatmul.f32.gmra.mxu0 %v563
    %v584 = vpop.f32.mrf.mxu0
    %v585 = vadd.f32 0.0, %v584
    %586 = vdwg.mxu0
    %587 = vrot.lane.b32.xlu0 %v64, 80
    %v588 = vpop.permute.xlu0 %587
    %589 = vrot.lane.b32.xlu0 %v64, 16
    %v590 = vpop.permute.xlu0 %589
    %v591 = vsel %vm92, %v588, 0
    %v593 = vsel %vm92, %v590, 0
    %595 = vmatpush.xpose.msra.mxu0 0.0
    %596 = vmatpush.xpose.msra.mxu0 0.0
    %597 = vmatpush.xpose.msra.mxu0 0.0
    %598 = vmatpush.xpose.msra.mxu0 0.0
    %599 = vmatpush.xpose.msra.mxu0 0.0
    %600 = vmatpush.xpose.msra.mxu0 0.0
    %601 = vmatpush.xpose.msra.mxu0 0.0
    %602 = vmatpush.xpose.msra.mxu0 0.0
    %603 = vmatpush.xpose.msra.mxu0 0.0
    %604 = vmatpush.xpose.msra.mxu0 0.0
    %605 = vmatpush.xpose.msra.mxu0 0.0
    %606 = vmatpush.xpose.msra.mxu0 0.0
    %607 = vmatpush.xpose.msra.mxu0 0.0
    %608 = vmatpush.xpose.msra.mxu0 0.0
    %609 = vmatpush.xpose.msra.mxu0 0.0
    %610 = vmatpush.xpose.msra.mxu0 %v593
    %611 = vmatmul.f32.gmra.mxu0 %v591
    %v612 = vpop.f32.mrf.mxu0
    %v613 = vadd.f32 0.0, %v612
    %614 = vdwg.mxu0
    %v615 = vsel %vm144, %v585, -inf
    %616 = vmax.xlane.f32.xlu0 %v615
    %v617 = vpop.xlane.xlu0 %616
    %v618 = vsel %vm144, %v613, -inf
    %619 = vmax.xlane.f32.xlu0 %v618
    %v620 = vpop.xlane.xlu0 %619
    %v621 = vsub.f32 %v585, %v617
    %v622 = vsub.f32 %v613, %v620
    %v623 = vmul.f32 %v621, 1.442695
    %v624 = vpow.pop %v623
    %v625 = vmul.f32 %v622, 1.442695
    %v626 = vpow.pop %v625
    %v627 = vsel %vm144, %v624, 0.0
    %628 = vadd.xlane.f32.xlu0 %v627
    %v629 = vpop.xlane.xlu0 %628
    %v630 = vsel %vm144, %v626, 0.0
    %631 = vadd.xlane.f32.xlu0 %v630
    %v632 = vpop.xlane.xlu0 %631
    %633 = vrot.lane.b32.xlu0 %v84, 80
    %v634 = vpop.permute.xlu0 %633
    %v637 = vsel %vm144, %v624, 0
    %639 = vmatpush.msra.mxu0 0.0
    %640 = vmatpush.msra.mxu0 0.0
    %641 = vmatpush.msra.mxu0 0.0
    %642 = vmatpush.msra.mxu0 0.0
    %643 = vmatpush.msra.mxu0 0.0
    %644 = vmatpush.msra.mxu0 0.0
    %645 = vmatpush.msra.mxu0 0.0
    %646 = vmatpush.msra.mxu0 0.0
    %647 = vmatpush.msra.mxu0 0.0
    %648 = vmatpush.msra.mxu0 0.0
    %649 = vmatpush.msra.mxu0 0.0
    %650 = vmatpush.msra.mxu0 0.0
    %651 = vmatpush.msra.mxu0 0.0
    %652 = vmatpush.msra.mxu0 0.0
    %653 = vmatpush.msra.mxu0 0.0
    %654 = vmatpush.msra.mxu0 %v634
    %655 = vmatmul.f32.gmra.mxu0 %v637
    %v656 = vpop.f32.mrf.mxu0
    %v657 = vadd.f32 0.0, %v656
    %658 = vdwg.mxu0
    %659 = vrot.lane.b32.xlu0 %v87, 80
    %v660 = vpop.permute.xlu0 %659
    %v663 = vsel %vm144, %v626, 0
    %665 = vmatpush.msra.mxu0 0.0
    %666 = vmatpush.msra.mxu0 0.0
    %667 = vmatpush.msra.mxu0 0.0
    %668 = vmatpush.msra.mxu0 0.0
    %669 = vmatpush.msra.mxu0 0.0
    %670 = vmatpush.msra.mxu0 0.0
    %671 = vmatpush.msra.mxu0 0.0
    %672 = vmatpush.msra.mxu0 0.0
    %673 = vmatpush.msra.mxu0 0.0
    %674 = vmatpush.msra.mxu0 0.0
    %675 = vmatpush.msra.mxu0 0.0
    %676 = vmatpush.msra.mxu0 0.0
    %677 = vmatpush.msra.mxu0 0.0
    %678 = vmatpush.msra.mxu0 0.0
    %679 = vmatpush.msra.mxu0 0.0
    %680 = vmatpush.msra.mxu0 %v660
    %681 = vmatmul.f32.gmra.mxu0 %v663
    %v682 = vpop.f32.mrf.mxu0
    %v683 = vadd.f32 0.0, %v682
    %684 = vdwg.mxu0
    %v685 = vrcp.pop %v629
    %v686 = vmul.f32 %v629, %v685
    %v687 = vsub.f32 1.0, %v686
    %v688 = vmul.f32 %v685, %v687
    %v689 = vadd.f32 %v685, %v688
    %vm690 = vweird.f32 %v629
    %vm691 = vweird.f32 %v685
    %vm692 = vmor %vm690, %vm691
    %v693 = vsel %vm692, %v685, %v689
    %v694 = vand.u32 2147483647, %v629
    %vm695 = vcmp.eq.f32.partialorder %v694, 8.507059e+37
    %v696 = vand.u32 %v629, 2147483648
    %v697 = vor.u32 1.1754944e-38, %v696
    %v698 = vsel %vm695, %v697, %v693
    %v699 = vmul.f32 1.0, %v698
    %v700 = vrcp.pop %v632
    %v701 = vmul.f32 %v632, %v700
    %v702 = vsub.f32 1.0, %v701
    %v703 = vmul.f32 %v700, %v702
    %v704 = vadd.f32 %v700, %v703
    %vm705 = vweird.f32 %v632
    %vm706 = vweird.f32 %v700
    %vm707 = vmor %vm705, %vm706
    %v708 = vsel %vm707, %v700, %v704
    %v709 = vand.u32 2147483647, %v632
    %vm710 = vcmp.eq.f32.partialorder %v709, 8.507059e+37
    %v711 = vand.u32 %v632, 2147483648
    %v712 = vor.u32 1.1754944e-38, %v711
    %v713 = vsel %vm710, %v712, %v708
    %v714 = vmul.f32 1.0, %v713
    %v715 = vmul.f32 %v657, %v699
    %v716 = vmul.f32 %v683, %v714
    %719 = vrot.lane.b32.xlu0 %v399, 16
    %v720 = vpop.permute.xlu0 %719
    %721 = vrot.lane.b32.xlu0 %v400, 16
    %v722 = vpop.permute.xlu0 %721
    %727 = vrot.lane.b32.xlu0 %v557, 32
    %v728 = vpop.permute.xlu0 %727
    %729 = vrot.lane.b32.xlu0 %v558, 32
    %v730 = vpop.permute.xlu0 %729
    %735 = vrot.lane.b32.xlu0 %v715, 48
    %v736 = vpop.permute.xlu0 %735
    %737 = vrot.lane.b32.xlu0 %v716, 48
    %v738 = vpop.permute.xlu0 %737
    %v741 = vsel %vm92, %v239, %v720
    %v742 = vsel %vm92, %v240, %v722
    %vm743 = vcmask 261120
    %v744 = vsel %vm743, %v741, %v728
    %v745 = vsel %vm743, %v742, %v730
    %vm746 = vcmask 392192
    %v747 = vsel %vm746, %v744, %v736
    %v748 = vsel %vm746, %v745, %v738
    %v749 = vld [vmem:[%s2] sm:$0xff]
    %v750 = vld [vmem:[%s2 + $0x8] sm:$0xff]
    %v751 = vld [vmem:[%s2 + $0x10] sm:$0xff]
    %v752 = vld [vmem:[%s2 + $0x18] sm:$0xff]
    %v753 = vld [vmem:[%s2 + $0x20] sm:$0xff]
    %v754 = vld [vmem:[%s2 + $0x28] sm:$0xff]
    %v755 = vld [vmem:[%s2 + $0x30] sm:$0xff]
    %v756 = vld [vmem:[%s2 + $0x38] sm:$0xff]
    %v757 = vld [vmem:[%s3] sm:$0x1]
    %v759 = vperm.slane %v757, 0
    %v762 = vsel %vm36, %v747, 0
    %v765 = vsel %vm36, %v748, 0
    %767 = vmatpush.msra.mxu0 0.0
    %768 = vmatpush.msra.mxu0 0.0
    %769 = vmatpush.msra.mxu0 0.0
    %770 = vmatpush.msra.mxu0 0.0
    %771 = vmatpush.msra.mxu0 0.0
    %772 = vmatpush.msra.mxu0 0.0
    %773 = vmatpush.msra.mxu0 0.0
    %774 = vmatpush.msra.mxu0 0.0
    %775 = vmatpush.msra.mxu0 %v756
    %776 = vmatpush.msra.mxu0 %v755
    %777 = vmatpush.msra.mxu0 %v754
    %778 = vmatpush.msra.mxu0 %v753
    %779 = vmatpush.msra.mxu0 %v752
    %780 = vmatpush.msra.mxu0 %v751
    %781 = vmatpush.msra.mxu0 %v750
    %782 = vmatpush.msra.mxu0 %v749
    %783 = vmatmul.f32.gmra.mxu0 %v762
    %v784 = vpop.f32.mrf.mxu0
    %v785 = vadd.f32 %v759, %v784
    %786 = vmatmul.f32.gmra.mxu0 %v765
    %v787 = vpop.f32.mrf.mxu0
    %v788 = vadd.f32 %v759, %v787
    %789 = vdwg.mxu0
    %790 = vst.msk [vmem:[#allocation2] sm:$0xff] %vm36, %v785
    %791 = vst.msk [vmem:[#allocation2 + $0x8] sm:$0xff] %vm36, %v788
    // Predicated region
    $region18: #{multi_head_attention.1} parent=1 // pred_check
      _
    $region19: #{multi_head_attention.1} parent=1 // pred_check_branch
      %793 = sbr.rel (0) target = $region21
    $region20: #{multi_head_attention.1} parent=1 // pred_region
      %795 = vsyncadd [#allocation3], 0
      %s796 = sshll.u32 [#allocation2], 4
      %s797 = int_to_ptr.vmem [resolvable:$true] %s796
      %s798 = sshll.u32 %s4, 4
      %s799 = int_to_ptr.hbm [resolvable:$true] %s798
      %804 = dma.vmem_to_hbm [thread:$0]  %s797, 256, %s799, [#allocation3], 128, 128, 8
    $region21: #{multi_head_attention.1} parent=1 // pred_fallthru
      _
    // Predicated region
    $region22: #{multi_head_attention.1} parent=1 // pred_check
      _
    $region23: #{multi_head_attention.1} parent=1 // pred_check_branch
      %806 = sbr.rel (0) target = $region25
    $region24: #{multi_head_attention.1} parent=1 // pred_region
      %808 = dma.done [#allocation3], 256
    $region25: #{multi_head_attention.1} parent=1 // pred_fallthru
      _
    %809 = vsyncpa [#allocation3], 1

</llo_original>
